<compile_context>
chip_gen: v7x
topology: tpu7x:2x2x1
jax: 0.10.0
libtpu: 0.0.40
codegen_flags: <defaults>
</compile_context>

<pallas_src>
import jax
import jax.numpy as jnp
from jax.experimental import pallas as pl
from jax.experimental.pallas import tpu as pltpu

_EPS = 1e-12  # F.normalize default eps


def _round_up(a, b):
    return ((a + b - 1) // b) * b


def _default_tiles():
    """Generation-tuned (tm, tn, tk) defaults; conservative fallback."""
    try:
        kind = jax.devices()[0].device_kind.lower()
    except Exception:  # pragma: no cover - device query failure
        kind = ""
    if "v7" in kind:
        return 768, 768, 1024
    if "v6" in kind:
        return 1024, 1024, 1024
    # v5e / v5 lite / unknown: smaller output tiles, large k.
    return 512, 512, 1024


def _vmem_budget_bytes(tm, tn, tk, operand_bytes, out_bytes):
    buf = 2 * (tm * tk + tk * tn) * operand_bytes   # double-buffered x / W tiles
    buf += 2 * (tm + tn) * 4                        # inv_x / inv_w side inputs
    buf += 2 * tm * tn * out_bytes                  # double-buffered output tile
    buf += tm * tn * 4                              # f32 accumulator scratch
    return buf


def _fcnorm_kernel(x_ref, w_ref, inv_x_ref, inv_w_ref, o_ref, acc_ref):
    """Grid = (i rows, j out-cols, k contraction).  Pure matmul + finalize."""
    k = pl.program_id(2)

    @pl.when(k == 0)
    def _init():
        acc_ref[...] = jnp.zeros_like(acc_ref)

    # bf16 (tm, tk) @ bf16 (tk, tn) -> f32 accumulate on the MXU.
    acc_ref[...] += jnp.dot(x_ref[...], w_ref[...],
                            preferred_element_type=jnp.float32)

    @pl.when(k == pl.num_programs(2) - 1)
    def _finalize():
        # Precomputed f32 inverse row norms applied as cheap output scales.
        o_ref[...] = (acc_ref[...] * inv_x_ref[...] *
                      inv_w_ref[...]).astype(o_ref.dtype)


def fcnorm_forward(x, weight, *, tm=None, tn=None, tk=None,
                   operand_dtype=jnp.bfloat16):
    """x: (N, in_features), weight: (out_features, in_features).

    operand_dtype controls the HBM storage / MXU input dtype of x and W
    (bf16 default per the roofline; pass jnp.float32 for tight accuracy).
    Row-norm math always stays in f32.
    """
    n, in_f = x.shape
    out_f, in_f_w = weight.shape
    assert in_f == in_f_w

    d_tm, d_tn, d_tk = _default_tiles()
    tm = d_tm if tm is None else tm
    tn = d_tn if tn is None else tn
    tk = d_tk if tk is None else tk

    # Clamp tiles to the (aligned) problem size.  tm is a multiple of 16 so
    # bf16 rows pack cleanly (2 rows / sublane); tn/tk stay lane-dense.
    tm = min(tm, _round_up(n, 16))
    tn = min(tn, _round_up(out_f, 128))
    tk = min(tk, _round_up(in_f, 128))

    # Keep at least one "parallel" grid axis with extent >= 2 when the problem
    # allows it (v7x has 2 TensorCores; a 1x1 parallel grid idles one core).
    if _round_up(n, tm) == tm and _round_up(out_f, tn) == tn:
        if tn >= 256 and tn % 256 == 0:
            tn //= 2
        elif tm >= 32 and tm % 32 == 0:
            tm //= 2

    n_pad = _round_up(n, tm)
    m_pad = _round_up(out_f, tn)
    k_pad = _round_up(in_f, tk)

    xf = x.astype(jnp.float32)
    wf = weight.astype(jnp.float32)

    # f32 inverse row norms (one pass each), padded to the grid shapes.
    # rsqrt(max(ss, eps^2)) == 1 / max(||row||, eps)  (matches F.normalize).
    inv_x = jax.lax.rsqrt(
        jnp.maximum(jnp.sum(xf * xf, axis=1, keepdims=True), _EPS * _EPS))
    inv_w = jax.lax.rsqrt(
        jnp.maximum(jnp.sum(wf * wf, axis=1), _EPS * _EPS))[None, :]
    inv_x_p = jnp.pad(inv_x, ((0, n_pad - n), (0, 0)))        # (n_pad, 1)
    inv_w_p = jnp.pad(inv_w, ((0, 0), (0, m_pad - out_f)))    # (1, m_pad)

    # Operands: zero-pad, pre-transpose W to (K, N), cast to bf16 for HBM.
    x_p = jnp.pad(xf, ((0, n_pad - n), (0, k_pad - in_f))).astype(operand_dtype)
    w_p = jnp.pad(wf.T, ((0, k_pad - in_f), (0, m_pad - out_f))
                  ).astype(operand_dtype)

    grid = (n_pad // tm, m_pad // tn, k_pad // tk)

    operand_bytes = jnp.dtype(operand_dtype).itemsize
    out_bytes = jnp.dtype(x.dtype).itemsize
    vmem_limit = _vmem_budget_bytes(tm, tn, tk, operand_bytes, out_bytes)
    vmem_limit = min(max(vmem_limit + (4 << 20), 16 << 20), 48 << 20)

    out = pl.pallas_call(
        _fcnorm_kernel,
        out_shape=jax.ShapeDtypeStruct((n_pad, m_pad), x.dtype),
        grid=grid,
        in_specs=[
            pl.BlockSpec((tm, tk), lambda i, j, k: (i, k)),   # x tile (bf16)
            pl.BlockSpec((tk, tn), lambda i, j, k: (k, j)),   # W.T tile (bf16)
            pl.BlockSpec((tm, 1), lambda i, j, k: (i, 0)),    # 1/||x_row|| (f32)
            pl.BlockSpec((1, tn), lambda i, j, k: (0, j)),    # 1/||w_row|| (f32)
        ],
        out_specs=pl.BlockSpec((tm, tn), lambda i, j, k: (i, j)),
        scratch_shapes=[
            pltpu.VMEM((tm, tn), jnp.float32),                # matmul accumulator
        ],
        compiler_params=pltpu.CompilerParams(
            dimension_semantics=("parallel", "parallel", "arbitrary"),
            vmem_limit_bytes=vmem_limit,
        ),
    )(x_p, w_p, inv_x_p, inv_w_p)

    return out[:n, :out_f]


def init_fcnorm_weight(key, in_features, out_features):
    """Deterministic emulation of:
       torch.FloatTensor(out, in).uniform_(-1, 1).renorm_(2, 1, 1e-5).mul_(1e5)
    renorm_(p=2, dim=1, maxnorm=1e-5): each slice along dim=1 (each column)
    with L2 norm > maxnorm is rescaled to norm == maxnorm.
    """
    w = jax.random.uniform(
        key, (out_features, in_features), minval=-1.0, maxval=1.0,
        dtype=jnp.float32)
    col_norm = jnp.sqrt(jnp.sum(w * w, axis=0, keepdims=True))  # (1, in)
    maxnorm = 1e-5
    scale = jnp.where(col_norm > maxnorm, maxnorm / (col_norm + 1e-7), 1.0)
    w = w * scale
    return w * 1e5


def fcnorm_reference(x, weight):
    xn = x / jnp.maximum(jnp.linalg.norm(x, axis=1, keepdims=True), _EPS)
    wn = weight / jnp.maximum(
        jnp.linalg.norm(weight, axis=1, keepdims=True), _EPS)
    return xn @ wn.T


if __name__ == "__main__":
    key = jax.random.PRNGKey(0)
    k_x, k_w = jax.random.split(key)

    N, IN_F, OUT_F = 8, 32, 16
    x = jax.random.normal(k_x, (N, IN_F), dtype=jnp.float32)
    weight = init_fcnorm_weight(k_w, IN_F, OUT_F)

    ref = fcnorm_reference(x, weight)

    # Default (bf16 operands) path: fast, loose tolerance.
    out_bf16 = jax.block_until_ready(fcnorm_forward(x, weight))
    assert out_bf16.shape == (N, OUT_F), out_bf16.shape
    assert jnp.allclose(out_bf16, ref, atol=2e-2, rtol=2e-2), (
        float(jnp.max(jnp.abs(out_bf16 - ref))))

    # f32-operand path: tight tolerance sanity check of the same kernel.
    out_f32 = jax.block_until_ready(
        fcnorm_forward(x, weight, operand_dtype=jnp.float32))
    assert jnp.allclose(out_f32, ref, atol=2e-5, rtol=2e-5), (
        float(jnp.max(jnp.abs(out_f32 - ref))))

    print("KERNEL_OK")
</pallas_src>

<mosaic_0001>
module attributes {stable_mosaic.version = 11 : i64} {
  func.func @_fcnorm_kernel(%arg0: i32, %arg1: i32, %arg2: i32, %arg3: memref<16x128xbf16, #tpu.memory_space<vmem>>, %arg4: memref<128x128xbf16, #tpu.memory_space<vmem>>, %arg5: memref<16x1xf32, #tpu.memory_space<vmem>>, %arg6: memref<1x128xf32, #tpu.memory_space<vmem>>, %arg7: memref<16x128xf32, #tpu.memory_space<vmem>>, %arg8: memref<16x128xf32, #tpu.memory_space<vmem>>) attributes {dimension_semantics = [#tpu.dimension_semantics<parallel>, #tpu.dimension_semantics<parallel>, #tpu.dimension_semantics<arbitrary>], iteration_bounds = array<i64: 1, 1, 1>, scalar_prefetch = 0 : i64, scratch_operands = 1 : i64, tpu.core_type = #tpu.core_type<tc>, window_params = [{transform_indices = @transform_0, window_bounds = array<i64: 16, 128>}, {transform_indices = @transform_1, window_bounds = array<i64: 128, 128>}, {transform_indices = @transform_2, window_bounds = array<i64: 16, 1>}, {transform_indices = @transform_3, window_bounds = array<i64: 1, 128>}, {transform_indices = @transform_4, window_bounds = array<i64: 16, 128>}]} {
    %c0_i32 = arith.constant 0 : i32
    %0 = arith.cmpi eq, %arg2, %c0_i32 : i32
    %1 = arith.extui %0 : i1 to i32
    %c0_i32_0 = arith.constant 0 : i32
    %2 = arith.cmpi ne, %1, %c0_i32_0 : i32
    scf.if %2 {
      %cst_10 = arith.constant 0.000000e+00 : f32
      %12 = vector.broadcast %cst_10 : f32 to vector<16x128xf32>
      %c0_11 = arith.constant 0 : index
      %c0_12 = arith.constant 0 : index
      %13 = vector.load %arg8[%c0_11, %c0_12] : memref<16x128xf32, #tpu.memory_space<vmem>>, vector<16x128xf32>
      tpu.vector_store %arg8[%c0_11, %c0_12], %12 {strides = array<i32>} : memref<16x128xf32, #tpu.memory_space<vmem>>, vector<16x128xf32>,
    } else {
    }
    %c0 = arith.constant 0 : index
    %c0_1 = arith.constant 0 : index
    %3 = vector.load %arg8[%c0, %c0_1] : memref<16x128xf32, #tpu.memory_space<vmem>>, vector<16x128xf32>
    %c0_2 = arith.constant 0 : index
    %c0_3 = arith.constant 0 : index
    %4 = vector.load %arg3[%c0_2, %c0_3] : memref<16x128xbf16, #tpu.memory_space<vmem>>, vector<16x128xbf16>
    %c0_4 = arith.constant 0 : index
    %c0_5 = arith.constant 0 : index
    %5 = vector.load %arg4[%c0_4, %c0_5] : memref<128x128xbf16, #tpu.memory_space<vmem>>, vector<128x128xbf16>
    %cst = arith.constant dense<0.000000e+00> : vector<16x128xf32>
    %6 = tpu.matmul %4, %5, %cst {dimension_numbers = #tpu.dot_dimension_numbers<[1], [0], [0], [1], [0, 0, 1, 1], [], []>} : vector<16x128xbf16>, vector<128x128xbf16>, vector<16x128xf32> -> vector<16x128xf32>
    %7 = arith.addf %3, %6 : vector<16x128xf32>
    %c0_6 = arith.constant 0 : index
    %c0_7 = arith.constant 0 : index
    %8 = vector.load %arg8[%c0_6, %c0_7] : memref<16x128xf32, #tpu.memory_space<vmem>>, vector<16x128xf32>
    tpu.vector_store %arg8[%c0_6, %c0_7], %7 {strides = array<i32>} : memref<16x128xf32, #tpu.memory_space<vmem>>, vector<16x128xf32>,
    %c0_i32_8 = arith.constant 0 : i32
    %9 = arith.cmpi eq, %arg2, %c0_i32_8 : i32
    %10 = arith.extui %9 : i1 to i32
    %c0_i32_9 = arith.constant 0 : i32
    %11 = arith.cmpi ne, %10, %c0_i32_9 : i32
    scf.if %11 {
      %c0_10 = arith.constant 0 : index
      %c0_11 = arith.constant 0 : index
      %12 = vector.load %arg8[%c0_10, %c0_11] : memref<16x128xf32, #tpu.memory_space<vmem>>, vector<16x128xf32>
      %c0_12 = arith.constant 0 : index
      %c0_13 = arith.constant 0 : index
      %13 = vector.load %arg5[%c0_12, %c0_13] : memref<16x1xf32, #tpu.memory_space<vmem>>, vector<16x1xf32>
      %14 = vector.broadcast %13 : vector<16x1xf32> to vector<16x128xf32>
      %15 = arith.mulf %12, %14 : vector<16x128xf32>
      %c0_14 = arith.constant 0 : index
      %c0_15 = arith.constant 0 : index
      %16 = vector.load %arg6[%c0_14, %c0_15] : memref<1x128xf32, #tpu.memory_space<vmem>>, vector<1x128xf32>
      %17 = vector.broadcast %16 : vector<1x128xf32> to vector<16x128xf32>
      %18 = arith.mulf %15, %17 : vector<16x128xf32>
      %c0_16 = arith.constant 0 : index
      %c0_17 = arith.constant 0 : index
      %19 = vector.load %arg7[%c0_16, %c0_17] : memref<16x128xf32, #tpu.memory_space<vmem>>, vector<16x128xf32>
      tpu.vector_store %arg7[%c0_16, %c0_17], %18 {strides = array<i32>} : memref<16x128xf32, #tpu.memory_space<vmem>>, vector<16x128xf32>,
    } else {
    }
    return
  }
  func.func @transform_0(%arg0: i32, %arg1: i32, %arg2: i32) -> (i32, i32) {
    %c0_i32 = arith.constant 0 : i32
    return %arg0, %arg2 : i32, i32
  }
  func.func @transform_1(%arg0: i32, %arg1: i32, %arg2: i32) -> (i32, i32) {
    %c0_i32 = arith.constant 0 : i32
    return %arg2, %arg1 : i32, i32
  }
  func.func @transform_2(%arg0: i32, %arg1: i32, %arg2: i32) -> (i32, i32) {
    %c0_i32 = arith.constant 0 : i32
    %c0_i32_0 = arith.constant 0 : i32
    return %arg0, %c0_i32 : i32, i32
  }
  func.func @transform_3(%arg0: i32, %arg1: i32, %arg2: i32) -> (i32, i32) {
    %c0_i32 = arith.constant 0 : i32
    %c0_i32_0 = arith.constant 0 : i32
    return %c0_i32, %arg1 : i32, i32
  }
  func.func @transform_4(%arg0: i32, %arg1: i32, %arg2: i32) -> (i32, i32) {
    %c0_i32 = arith.constant 0 : i32
    return %arg0, %arg1 : i32, i32
  }
}

</mosaic_0001>

<llo_original>
// kernel: tpu_custom_call.1
$region0: #{tpu_custom_call.1}
  #allocation0 [shape = 'u32[]', space=smem, size = 0x4, offset = 0x4, fixed_abs, tag = 'smem constant byte address 0x4 - core index']
  #allocation1 [shape = 'u32[144,128]{1,0:T(1,128)}', space=vmem, size = 0x12000, scoped, tag = 'internal scratch']
  #allocation2 [shape = 'f32[16,128]{1,0:T(8,128)}', space=vmem, size = 0x2000, scoped, tag = 'scratch operand']
  %s0 = inlined_call_operand.vmem [shape: bf16[16,128], index: 0, kind: input, shape index: {}]
  %s1 = inlined_call_operand.hbm [shape: bf16[128,128], index: 1, kind: input, shape index: {}]
  %s2 = inlined_call_operand.vmem [shape: f32[16,1], index: 2, kind: input, shape index: {}]
  %s3 = inlined_call_operand.vmem [shape: f32[1,128], index: 3, kind: input, shape index: {}]
  %s4 = inlined_call_operand.hbm [shape: f32[16,128], index: 4, kind: output, shape index: {}]
  %s5 = sld [smem:[#allocation0]]
  $region38: #{tpu_custom_call.1} parent=0
    _
  %s7 = ssub.s32 1, %s5
  %s8 = scalar_select 0, %s7, %s5
  $region1: #{tpu_custom_call.1} parent=0
    #allocation3 [shape = 'u8[32768]{0}', space=vmem, size = 0x8000, scoped, tag = 'input window, operand 1, single buffered']
    #allocation4 [shape = 's32[1]{0}', space=sflag, size = 0x4, scoped, tag = 'scoped memory for tpu_custom_call.1']
    #allocation5 [shape = 's32[1]{0}', space=sflag, size = 0x4, scoped, tag = 'scoped memory for tpu_custom_call.1']
    #allocation6 [shape = 'u8[8192]{0}', space=vmem, size = 0x2000, scoped, tag = 'output window, operand 0, single buffered']
    %9 = vsyncpa [#allocation4], 0
    %10 = vsyncpa [#allocation5], 0
    // Predicated region
    $region2: #{tpu_custom_call.1} parent=1 // pred_check
      _
    $region3: #{tpu_custom_call.1} parent=1 // pred_check_branch
      %12 = sbr.rel (0) target = $region5
    $region4: #{tpu_custom_call.1} parent=1 // pred_region
      _
    $region5: #{tpu_custom_call.1} parent=1 // pred_fallthru
      _
    // Predicated region
    $region6: #{tpu_custom_call.1} parent=1 // pred_check
      _
    $region7: #{tpu_custom_call.1} parent=1 // pred_check_branch
      %14 = sbr.rel (0) target = $region9
    $region8: #{tpu_custom_call.1} parent=1 // pred_region
      %s16 = ssub.s32 1024, 1024
      %17 = vsyncadd [#allocation4], %s16
      %s18 = sshll.u32 [#allocation3], 4
      %s19 = int_to_ptr.vmem [resolvable:$true] %s18
      %24 = dma.hbm_to_vmem [thread:$0]  %s1, 1024, %s19, [#allocation4], 64, 64, 4
    $region9: #{tpu_custom_call.1} parent=1 // pred_fallthru
      _
    // Predicated region
    $region10: #{tpu_custom_call.1} parent=1 // pred_check
      _
    $region11: #{tpu_custom_call.1} parent=1 // pred_check_branch
      %26 = sbr.rel (0) target = $region13
    $region12: #{tpu_custom_call.1} parent=1 // pred_region
      _
    $region13: #{tpu_custom_call.1} parent=1 // pred_fallthru
      _
    // Predicated region
    $region14: #{tpu_custom_call.1} parent=1 // pred_check
      _
    $region15: #{tpu_custom_call.1} parent=1 // pred_check_branch
      %28 = sbr.rel (0) target = $region17
    $region16: #{tpu_custom_call.1} parent=1 // pred_region
      _
    $region17: #{tpu_custom_call.1} parent=1 // pred_fallthru
      _
    // Predicated region
    $region18: #{tpu_custom_call.1} parent=1 // pred_check
      _
    $region19: #{tpu_custom_call.1} parent=1 // pred_check_branch
      %30 = sbr.rel (0) target = $region21
    $region20: #{tpu_custom_call.1} parent=1 // pred_region
      %31 = dma.done [#allocation4], 1024
    $region21: #{tpu_custom_call.1} parent=1 // pred_fallthru
      _
    %p33 = scmp.eq.s32.totalorder 0, 0
    // Predicated region
    $region22: #{tpu_custom_call.1} parent=1 // pred_check
      %p34 = pneg %p33
    $region23: #{tpu_custom_call.1} parent=1 // pred_check_branch
      %36 = sbr.rel (%p34) target = $region25
    $region24: #{tpu_custom_call.1} parent=1 // pred_region
      %37 = vst [vmem:[#allocation2] sm:$0xff] 0.0
      %38 = vst [vmem:[#allocation2 + $0x8] sm:$0xff] 0.0
    $region25: #{tpu_custom_call.1} parent=1 // pred_fallthru
      _
    %v39 = vld [vmem:[#allocation2] sm:$0xff]
    %v40 = vld [vmem:[#allocation2 + $0x8] sm:$0xff]
    %v41 = vld [vmem:[%s0] sm:$0xf]
    %v42 = vld [vmem:[%s0 + $0x4] sm:$0xf]
    %v43 = vld [vmem:[#allocation3] sm:$0xf]
    %v44 = vld [vmem:[#allocation3 + $0x4] sm:$0xf]
    %v45 = vld [vmem:[#allocation3 + $0x8] sm:$0xf]
    %v46 = vld [vmem:[#allocation3 + $0xc] sm:$0xf]
    %v47 = vld [vmem:[#allocation3 + $0x10] sm:$0xf]
    %v48 = vld [vmem:[#allocation3 + $0x14] sm:$0xf]
    %v49 = vld [vmem:[#allocation3 + $0x18] sm:$0xf]
    %v50 = vld [vmem:[#allocation3 + $0x1c] sm:$0xf]
    %v51 = vld [vmem:[#allocation3 + $0x20] sm:$0xf]
    %v52 = vld [vmem:[#allocation3 + $0x24] sm:$0xf]
    %v53 = vld [vmem:[#allocation3 + $0x28] sm:$0xf]
    %v54 = vld [vmem:[#allocation3 + $0x2c] sm:$0xf]
    %v55 = vld [vmem:[#allocation3 + $0x30] sm:$0xf]
    %v56 = vld [vmem:[#allocation3 + $0x34] sm:$0xf]
    %v57 = vld [vmem:[#allocation3 + $0x38] sm:$0xf]
    %v58 = vld [vmem:[#allocation3 + $0x3c] sm:$0xf]
    %v61 = vunpack.c.l.b16 %v41
    %v62 = vunpack.c.l.b16 %v42
    %v63 = vpack.c.b16 %v62, %v61
    %v81 = vunpack.c.l.b16 %v43
    %v82 = vunpack.c.l.b16 %v44
    %v83 = vunpack.c.l.b16 %v45
    %v84 = vunpack.c.l.b16 %v46
    %v85 = vunpack.c.l.b16 %v47
    %v86 = vunpack.c.l.b16 %v48
    %v87 = vunpack.c.l.b16 %v49
    %v88 = vunpack.c.l.b16 %v50
    %v89 = vunpack.c.l.b16 %v51
    %v90 = vunpack.c.l.b16 %v52
    %v91 = vunpack.c.l.b16 %v53
    %v92 = vunpack.c.l.b16 %v54
    %v93 = vunpack.c.l.b16 %v55
    %v94 = vunpack.c.l.b16 %v56
    %v95 = vunpack.c.l.b16 %v57
    %v96 = vunpack.c.l.b16 %v58
    %v97 = vpack.c.b16 %v82, %v81
    %v98 = vpack.c.b16 %v84, %v83
    %v99 = vpack.c.b16 %v86, %v85
    %v100 = vpack.c.b16 %v88, %v87
    %v101 = vpack.c.b16 %v90, %v89
    %v102 = vpack.c.b16 %v92, %v91
    %v103 = vpack.c.b16 %v94, %v93
    %v104 = vpack.c.b16 %v96, %v95
    %113 = vmatprep.subr.bf16.mxu0 0
    %114 = vmatpush1.bf16.msra.mxu0 %v97
    %115 = vmatprep.subr.bf16.mxu0 0
    %116 = vmatpush1.bf16.msra.mxu0 %v98
    %117 = vmatprep.subr.bf16.mxu0 0
    %118 = vmatpush1.bf16.msra.mxu0 %v99
    %119 = vmatprep.subr.bf16.mxu0 0
    %120 = vmatpush1.bf16.msra.mxu0 %v100
    %121 = vmatprep.subr.bf16.mxu0 0
    %122 = vmatpush1.bf16.msra.mxu0 %v101
    %123 = vmatprep.subr.bf16.mxu0 0
    %124 = vmatpush1.bf16.msra.mxu0 %v102
    %125 = vmatprep.subr.bf16.mxu0 0
    %126 = vmatpush1.bf16.msra.mxu0 %v103
    %127 = vmatprep.subr.bf16.mxu0 0
    %128 = vmatpush1.bf16.msra.mxu0 %v104
    %129 = vmatprep.subr.bf16.mxu0 0
    %130 = vmatpush1.bf16.msra.mxu0 0
    %131 = vmatprep.subr.bf16.mxu0 0
    %132 = vmatpush1.bf16.msra.mxu0 0
    %133 = vmatprep.subr.bf16.mxu0 0
    %134 = vmatpush1.bf16.msra.mxu0 0
    %135 = vmatprep.subr.bf16.mxu0 0
    %136 = vmatpush1.bf16.msra.mxu0 0
    %137 = vmatprep.subr.bf16.mxu0 0
    %138 = vmatpush1.bf16.msra.mxu0 0
    %139 = vmatprep.subr.bf16.mxu0 0
    %140 = vmatpush1.bf16.msra.mxu0 0
    %141 = vmatprep.subr.bf16.mxu0 0
    %142 = vmatpush1.bf16.msra.mxu0 0
    %143 = vmatprep.subr.bf16.mxu0 0
    %144 = vmatpush1.bf16.msra.mxu0 0
    %145 = vmatprep.mubr.bf16.mxu0 0
    %146 = vmatmul.mubr.bf16.gmra.mrb[0].mxu0 %v63
    %v147 = vpop.f32.mrb[0].mxu0
    %v148 = vadd.f32 0.0, %v147
    %v149 = vpop.f32.mrb[0].mxu0
    %v150 = vpop.f32.mrb[0].mxu0
    %v151 = vadd.f32 0.0, %v150
    %v152 = vpop.f32.mrb[0].mxu0
    %153 = vdwg.mxu0
    %v154 = vadd.f32 %v39, %v148
    %v155 = vadd.f32 %v40, %v151
    %156 = vst [vmem:[#allocation2] sm:$0xff] %v154
    %157 = vst [vmem:[#allocation2 + $0x8] sm:$0xff] %v155
    // Predicated region
    $region26: #{tpu_custom_call.1} parent=1 // pred_check
      %p158 = pneg %p33
    $region27: #{tpu_custom_call.1} parent=1 // pred_check_branch
      %160 = sbr.rel (%p158) target = $region29
    $region28: #{tpu_custom_call.1} parent=1 // pred_region
      %v161 = vld [vmem:[#allocation2] sm:$0xff]
      %v162 = vld [vmem:[#allocation2 + $0x8] sm:$0xff]
      %v163 = vld [vmem:[%s2] sm:$0xff]
      %v164 = vld [vmem:[%s2 + $0x8] sm:$0xff]
      %166 = vset.pattern.permute.xlu0 0
      %167 = vperm.xlu0 %166, %v163
      %v168 = vpop.permute.xlu0 %167
      %171 = vset.pattern.permute.xlu0 0
      %172 = vperm.xlu0 %171, %v164
      %v173 = vpop.permute.xlu0 %172
      %v175 = vmul.f32 %v161, %v168
      %v176 = vmul.f32 %v162, %v173
      %v177 = vld [vmem:[%s3] sm:$0x1]
      %v179 = vlaneseq
      %v180 = vshrl.u32 %v179, 7
      %v181 = vsub.s32 0, %v180
      %v182 = vrot.slane %v177, %v181
      %v184 = vmul.f32 %v175, %v182
      %v185 = vmul.f32 %v176, %v182
      %186 = vst [vmem:[#allocation6] sm:$0xff] %v184
      %187 = vst [vmem:[#allocation6 + $0x8] sm:$0xff] %v185
    $region29: #{tpu_custom_call.1} parent=1 // pred_fallthru
      _
    // Predicated region
    $region30: #{tpu_custom_call.1} parent=1 // pred_check
      _
    $region31: #{tpu_custom_call.1} parent=1 // pred_check_branch
      %189 = sbr.rel (0) target = $region33
    $region32: #{tpu_custom_call.1} parent=1 // pred_region
      %s191 = ssub.s32 256, 256
      %192 = vsyncadd [#allocation5], %s191
      %s193 = sshll.u32 [#allocation6], 4
      %s194 = int_to_ptr.vmem [resolvable:$true] %s193
      %199 = dma.vmem_to_hbm [thread:$0]  %s194, 256, %s4, [#allocation5], 128, 128, 8
    $region33: #{tpu_custom_call.1} parent=1 // pred_fallthru
      _
    // Predicated region
    $region34: #{tpu_custom_call.1} parent=1 // pred_check
      _
    $region35: #{tpu_custom_call.1} parent=1 // pred_check_branch
      %201 = sbr.rel (0) target = $region37
    $region36: #{tpu_custom_call.1} parent=1 // pred_region
      %202 = dma.done [#allocation5], 256
    $region37: #{tpu_custom_call.1} parent=1 // pred_fallthru
      _
    %203 = vsyncpa [#allocation4], 1
    %204 = vsyncpa [#allocation5], 1

</llo_original>
